<compile_context>
chip_gen: v7x
topology: tpu7x:2x2x1
jax: 0.10.0
libtpu: 0.0.40
codegen_flags: <defaults>
</compile_context>

<pallas_src>
import numpy as np
import jax
import jax.numpy as jnp
from jax.experimental import pallas as pl
from jax.experimental.pallas import tpu as pltpu

TIMESTEPS = 1000
MAX_VAR = 2.0
LANE = 128
VMEM_TILE_BUDGET = 20 * 1024 * 1024   # target for (double-buffered) per-tile footprint


# ----------------------------- schedule (host-side numpy, like PyTorch __init__) ----
def cosine_generate_mt(T):
    m_t = 1.0075 ** np.linspace(0, T, T)
    m_t = m_t / m_t[-1]
    m_t[-1] = 0.999
    return m_t


def make_schedule(T=TIMESTEPS):
    m_t = cosine_generate_mt(T)
    variance_t = 2.0 * (m_t - m_t ** 2) * MAX_VAR
    return jnp.asarray(m_t, jnp.float32), jnp.asarray(variance_t, jnp.float32)


def _round_up(x, m):
    return (x + m - 1) // m * m


def _cdiv(a, b):
    return (a + b - 1) // b


def _num_tensorcores_per_chip():
    try:
        kind = jax.devices()[0].device_kind.lower()
    except Exception:
        return 1
    return 2 if ("v7" in kind or "7x" in kind) else 1


# ----------------------------- params (padded / fused once at init) -----------------
def make_params(key, D, H):
    # 4 spare lane columns are reserved in the feature dim: [t_norm, m_t, sigma_t, 1.0].
    D_pad = _round_up(D + 4, LANE)
    # 256-alignment fills the v6e/v7x 256x256 MXU; 128 is enough on v5e / small H.
    H_pad = _round_up(H, 256) if H > LANE else _round_up(H, LANE)
    m_t, variance_t = make_schedule(TIMESTEPS)

    k1, k2, k3, k4 = jax.random.split(key, 4)
    w1 = jax.random.normal(k1, (D, H), jnp.float32) / np.sqrt(D)
    wc = jax.random.normal(k2, (D, H), jnp.float32) / np.sqrt(D)
    wt = jax.random.normal(k3, (H,), jnp.float32) * 0.01   # applied to t / TIMESTEPS
    b1 = jnp.zeros((H,), jnp.float32)
    w2 = jax.random.normal(k4, (H, D), jnp.float32) / np.sqrt(H)
    b2 = jnp.zeros((1, D), jnp.float32)

    # Fused first-layer weights along the contraction axis: [w1 ; wc(+wt,+b1 rows)].
    w1_top = jnp.zeros((D_pad, H_pad), jnp.float32).at[:D, :H].set(w1)
    w1_bot = jnp.zeros((D_pad, H_pad), jnp.float32).at[:D, :H].set(wc)
    w1_bot = w1_bot.at[D, :H].set(wt)        # multiplies cond col D   (t / TIMESTEPS)
    w1_bot = w1_bot.at[D + 3, :H].set(b1)    # multiplies cond col D+3 (constant 1.0)
    w1_big = jnp.concatenate([w1_top, w1_bot], axis=0).astype(jnp.bfloat16)  # (2*D_pad, H_pad)
    w2_pad = jnp.zeros((H_pad, D_pad), jnp.float32).at[:H, :D].set(w2).astype(jnp.bfloat16)
    b2_pad = jnp.zeros((1, D_pad), jnp.float32).at[:, :D].set(b2)

    # Padding invariants the kernel relies on (garbage x_t / cond pad columns must be
    # annihilated by zero weight rows; out pad columns must stay exactly zero).
    w1_np = np.asarray(jnp.asarray(w1_big, jnp.float32))
    w2_np = np.asarray(jnp.asarray(w2_pad, jnp.float32))
    b2_np = np.asarray(b2_pad)
    assert np.all(w1_np[D:D_pad, :] == 0.0)                       # x_t pad rows
    assert np.all(w1_np[D_pad + D + 1:D_pad + D + 3, :] == 0.0)   # m / sigma feature rows
    assert np.all(w1_np[D_pad + D + 4:, :] == 0.0)                # remaining cond pad rows
    assert np.all(w2_np[:, D:] == 0.0) and np.all(b2_np[:, D:] == 0.0)

    return dict(m_t=m_t, variance_t=variance_t,
                w1_big=w1_big, w2=w2_pad, b2=b2_pad,
                D=D, H=H, D_pad=D_pad, H_pad=H_pad)


# ----------------------------- tiling plan -------------------------------------------
def _tile_vmem_bytes(TB, D_pad, H_pad):
    data = 3 * TB * D_pad * 4                                    # x0 / cond / noise (f32)
    wts = (2 * D_pad * H_pad + H_pad * D_pad) * 2 + D_pad * 4    # bf16 weights + b2
    outs = TB * D_pad * 4 + 8 * D_pad * 4                        # out block + loss block
    return 2 * (data + wts + outs)                               # default double-buffering


def plan_tiles(B, params):
    D_pad, H_pad = params["D_pad"], params["H_pad"]
    B_min = _round_up(max(B, 8), 8)          # only 8-sublane alignment is required
    TB = min(B_min, 512)
    if B_min >= 16 and _num_tensorcores_per_chip() >= 2:
        # v7x: make sure the "parallel" grid has >= 2 steps so both TensorCores work.
        TB = min(TB, _round_up(_cdiv(B_min, 2), 8))
    while _tile_vmem_bytes(TB, D_pad, H_pad) > VMEM_TILE_BUDGET and TB > 8:
        TB = max(8, _round_up(TB // 2, 8))
    B_pad = _round_up(B_min, TB)
    return TB, B_pad, B_pad // TB


# ----------------------------- input preparation (shared by kernel path & reference) -
def _prepare_inputs(img, txt, params, key, B_pad):
    B, C, L = img.shape
    D = C * L
    assert D == params["D"]
    D_pad = params["D_pad"]

    key_t, key_n = jax.random.split(key)
    t = jax.random.randint(key_t, (B,), 0, TIMESTEPS)
    noise = jax.random.normal(key_n, (B, D), jnp.float32)

    # `extract` (one_hot -> mm -> sqrt -> diag) reduces to |a[t]| per batch element.
    m_b = jnp.abs(params["m_t"][t])
    sig_b = jnp.sqrt(jnp.abs(params["variance_t"][t]))
    t_norm = t.astype(jnp.float32) / TIMESTEPS    # normalized time feature (bf16-friendly)

    pad_b = B_pad - B
    pad_d = D_pad - D

    x0 = jnp.pad(img.reshape(B, D), ((0, pad_b), (0, pad_d)))
    noise_p = jnp.pad(noise, ((0, pad_b), (0, pad_d)))

    # cond = [ txt | t_norm | m_t | sigma_t | 1.0 | 0 ... ]   (one concat + one pad)
    extra = jnp.stack([t_norm, m_b, sig_b, jnp.ones((B,), jnp.float32)], axis=1)  # (B, 4)
    cond = jnp.pad(jnp.concatenate([txt.reshape(B, D), extra], axis=1),
                   ((0, pad_b), (0, D_pad - D - 4)))

    return dict(x0=x0, cond=cond, noise=noise_p)


# ----------------------------- Pallas forward ----------------------------------------
def gaussian_diffusion_forward(img, txt, params, key):
    """img, txt: (B, C, L) float32 in [0,1]. Returns (recloss scalar, model_out (B, C*L))."""
    B, C, L = img.shape
    D, D_pad, H_pad = params["D"], params["D_pad"], params["H_pad"]

    TB, B_pad, n_bt = plan_tiles(B, params)
    prep = _prepare_inputs(img, txt, params, key, B_pad)

    def kernel(x0_ref, cond_ref, noise_ref, w1_ref, w2_ref, b2_ref, loss_ref, out_ref):
        x0 = x0_ref[...]          # (TB, D_pad) f32, zero padded
        y = cond_ref[...]         # (TB, D_pad) f32; cols D..D+3 carry t_norm, m, sigma, 1
        noise = noise_ref[...]    # (TB, D_pad) f32, zero padded

        m = y[:, D + 1:D + 2]     # (TB, 1) per-row m_t      -> lane-broadcast below
        sig = y[:, D + 2:D + 3]   # (TB, 1) per-row sigma_t

        # normalize_to_neg_one_to_one + q_sample (objective == 'noise'), f32 elementwise
        x0n = x0 * 2.0 - 1.0
        x_t = (1.0 - m) * x0n + m * y + sig * noise

        # Fused stand-in denoiser: one MXU pass over [x_t | cond(+t,+bias)], bf16 / f32 acc.
        # Garbage values in x_t's padded columns hit zero rows of w1_big (asserted at init).
        x_cat = jnp.concatenate([x_t, y], axis=-1).astype(jnp.bfloat16)      # (TB, 2*D_pad)
        h = jnp.dot(x_cat, w1_ref[...], preferred_element_type=jnp.float32)  # b1 fused
        h = jnp.maximum(h, 0.0)
        out = jnp.dot(h.astype(jnp.bfloat16), w2_ref[...],
                      preferred_element_type=jnp.float32) + b2_ref[...]      # (TB, D_pad)

        out_ref[...] = out        # lane-dense (TB, D_pad) unmasked store

        # Partial sum of squared error, folded to an 8-sublane block (unmasked store).
        # Padded feature columns are zero in both noise and out by construction.
        diff = noise - out

        def partial(d):
            return jnp.sum((d * d).reshape(TB // 8, 8, D_pad), axis=0)       # (8, D_pad)

        if B == B_pad:            # static: no padded batch rows -> never mask
            loss_ref[...] = partial(diff)
        else:
            pid = pl.program_id(0)
            # All padded rows live in the last tile (B_pad - B < TB by construction).
            @pl.when(pid != n_bt - 1)
            def _():
                loss_ref[...] = partial(diff)

            @pl.when(pid == n_bt - 1)
            def _():
                row = jax.lax.broadcasted_iota(jnp.int32, diff.shape, 0) + pid * TB
                loss_ref[...] = partial(jnp.where(row < B, diff, 0.0))

    data_spec = pl.BlockSpec((TB, D_pad), lambda i: (i, 0))
    w1_spec = pl.BlockSpec((2 * D_pad, H_pad), lambda i: (0, 0))
    w2_spec = pl.BlockSpec((H_pad, D_pad), lambda i: (0, 0))
    b2_spec = pl.BlockSpec((1, D_pad), lambda i: (0, 0))

    in_arrays = (prep["x0"], prep["cond"], prep["noise"],
                 params["w1_big"], params["w2"], params["b2"])
    flops = 2 * B_pad * (2 * D_pad) * H_pad + 2 * B_pad * H_pad * D_pad
    bytes_accessed = int(sum(a.size * a.dtype.itemsize for a in in_arrays)
                         + (n_bt * 8 + B_pad) * D_pad * 4)
    tile_bytes = _tile_vmem_bytes(TB, D_pad, H_pad)
    vmem_limit = int(min(max(2 * tile_bytes, 16 << 20), 64 << 20))

    loss_part, out_pad = pl.pallas_call(
        kernel,
        out_shape=(jax.ShapeDtypeStruct((n_bt * 8, D_pad), jnp.float32),
                   jax.ShapeDtypeStruct((B_pad, D_pad), jnp.float32)),
        grid=(n_bt,),
        in_specs=[data_spec, data_spec, data_spec, w1_spec, w2_spec, b2_spec],
        out_specs=(pl.BlockSpec((8, D_pad), lambda i: (i, 0)),
                   pl.BlockSpec((TB, D_pad), lambda i: (i, 0))),
        compiler_params=pltpu.CompilerParams(
            dimension_semantics=("parallel",),
            vmem_limit_bytes=vmem_limit),
        cost_estimate=pl.CostEstimate(flops=flops, transcendentals=0,
                                      bytes_accessed=bytes_accessed),
    )(*in_arrays)

    recloss = jnp.sum(loss_part) / (B * D)   # F.mse_loss mean over B*C*L elements
    model_out = out_pad[:B, :D]              # == model_out.view(b, -1)
    return recloss, model_out


# ----------------------------- pure-JAX reference (same prepared inputs) -------------
def reference_forward(prep, params, B, D):
    x0, y, noise = prep["x0"], prep["cond"], prep["noise"]
    m = y[:, D + 1:D + 2]
    sig = y[:, D + 2:D + 3]
    x0n = x0 * 2.0 - 1.0
    x_t = (1.0 - m) * x0n + m * y + sig * noise
    x_cat = jnp.concatenate([x_t, y], axis=-1).astype(jnp.bfloat16)
    h = jnp.maximum(jnp.dot(x_cat, params["w1_big"], preferred_element_type=jnp.float32), 0.0)
    out = jnp.dot(h.astype(jnp.bfloat16), params["w2"],
                  preferred_element_type=jnp.float32) + params["b2"]
    diff = (noise - out)[:B]
    recloss = jnp.sum(diff * diff) / (B * D)
    return recloss, out[:B, :D]


# ----------------------------- main ---------------------------------------------------
if __name__ == "__main__":
    B, C, L = 2, 4, 16      # batch, channels, seq_length  -> D = 64
    D = C * L
    H = 128                 # hidden width of the synthetic denoiser

    params = make_params(jax.random.PRNGKey(42), D, H)

    key = jax.random.PRNGKey(0)
    ikey, tkey, fkey = jax.random.split(key, 3)
    img = jax.random.uniform(ikey, (B, C, L), jnp.float32)   # data in [0, 1]
    txt = jax.random.uniform(tkey, (B, C, L), jnp.float32)   # condition ("txt")

    recloss, model_out = gaussian_diffusion_forward(img, txt, params, fkey)
    jax.block_until_ready((recloss, model_out))

    _, B_pad, _ = plan_tiles(B, params)
    prep = _prepare_inputs(img, txt, params, fkey, B_pad)    # same key -> same t/noise
    ref_loss, ref_out = reference_forward(prep, params, B, D)

    assert model_out.shape == (B, D)
    np.testing.assert_allclose(np.asarray(recloss), np.asarray(ref_loss), rtol=1e-2, atol=1e-2)
    np.testing.assert_allclose(np.asarray(model_out), np.asarray(ref_out), rtol=1e-2, atol=1e-2)

    print("KERNEL_OK")
</pallas_src>

<mosaic_0001>
module attributes {stable_mosaic.version = 11 : i64} {
  func.func @kernel(%arg0: i32, %arg1: memref<8x128xf32, #tpu.memory_space<vmem>>, %arg2: memref<8x128xf32, #tpu.memory_space<vmem>>, %arg3: memref<8x128xf32, #tpu.memory_space<vmem>>, %arg4: memref<256x128xbf16, #tpu.memory_space<vmem>>, %arg5: memref<128x128xbf16, #tpu.memory_space<vmem>>, %arg6: memref<1x128xf32, #tpu.memory_space<vmem>>, %arg7: memref<8x128xf32, #tpu.memory_space<vmem>>, %arg8: memref<8x128xf32, #tpu.memory_space<vmem>>) attributes {dimension_semantics = [#tpu.dimension_semantics<parallel>], iteration_bounds = array<i64: 1>, scalar_prefetch = 0 : i64, scratch_operands = 0 : i64, tpu.core_type = #tpu.core_type<tc>, window_params = [{transform_indices = @transform_0, window_bounds = array<i64: 8, 128>}, {transform_indices = @transform_1, window_bounds = array<i64: 8, 128>}, {transform_indices = @transform_2, window_bounds = array<i64: 8, 128>}, {pipeline_mode = #tpu.pipeline_mode<synchronous>, transform_indices = @transform_3, window_bounds = array<i64: 256, 128>}, {pipeline_mode = #tpu.pipeline_mode<synchronous>, transform_indices = @transform_4, window_bounds = array<i64: 128, 128>}, {pipeline_mode = #tpu.pipeline_mode<synchronous>, transform_indices = @transform_5, window_bounds = array<i64: 1, 128>}, {transform_indices = @transform_6, window_bounds = array<i64: 8, 128>}, {transform_indices = @transform_7, window_bounds = array<i64: 8, 128>}]} {
    %c0 = arith.constant 0 : index
    %c0_0 = arith.constant 0 : index
    %0 = vector.load %arg1[%c0, %c0_0] : memref<8x128xf32, #tpu.memory_space<vmem>>, vector<8x128xf32>
    %c0_1 = arith.constant 0 : index
    %c0_2 = arith.constant 0 : index
    %1 = vector.load %arg2[%c0_1, %c0_2] : memref<8x128xf32, #tpu.memory_space<vmem>>, vector<8x128xf32>
    %c0_3 = arith.constant 0 : index
    %c0_4 = arith.constant 0 : index
    %2 = vector.load %arg3[%c0_3, %c0_4] : memref<8x128xf32, #tpu.memory_space<vmem>>, vector<8x128xf32>
    %3 = vector.extract_strided_slice %1 {offsets = [0, 65], sizes = [8, 1], strides = [1, 1]} : vector<8x128xf32> to vector<8x1xf32>
    %4 = vector.extract_strided_slice %1 {offsets = [0, 66], sizes = [8, 1], strides = [1, 1]} : vector<8x128xf32> to vector<8x1xf32>
    %cst = arith.constant 2.000000e+00 : f32
    %5 = vector.broadcast %cst : f32 to vector<8x128xf32>
    %6 = arith.mulf %0, %5 : vector<8x128xf32>
    %cst_5 = arith.constant 1.000000e+00 : f32
    %7 = vector.broadcast %cst_5 : f32 to vector<8x128xf32>
    %8 = arith.subf %6, %7 : vector<8x128xf32>
    %cst_6 = arith.constant 1.000000e+00 : f32
    %9 = vector.broadcast %cst_6 : f32 to vector<8x1xf32>
    %10 = arith.subf %9, %3 : vector<8x1xf32>
    %11 = vector.broadcast %10 : vector<8x1xf32> to vector<8x128xf32>
    %12 = arith.mulf %11, %8 : vector<8x128xf32>
    %13 = vector.broadcast %3 : vector<8x1xf32> to vector<8x128xf32>
    %14 = arith.mulf %13, %1 : vector<8x128xf32>
    %15 = arith.addf %12, %14 : vector<8x128xf32>
    %16 = vector.broadcast %4 : vector<8x1xf32> to vector<8x128xf32>
    %17 = arith.mulf %16, %2 : vector<8x128xf32>
    %18 = arith.addf %15, %17 : vector<8x128xf32>
    %19 = tpu.concatenate %18, %1 in 1 : vector<8x128xf32>, vector<8x128xf32> -> vector<8x256xf32>
    %20 = arith.truncf %19 : vector<8x256xf32> to vector<8x256xbf16>
    %c0_7 = arith.constant 0 : index
    %c0_8 = arith.constant 0 : index
    %21 = vector.load %arg4[%c0_7, %c0_8] : memref<256x128xbf16, #tpu.memory_space<vmem>>, vector<256x128xbf16>
    %cst_9 = arith.constant dense<0.000000e+00> : vector<8x128xf32>
    %22 = tpu.matmul %20, %21, %cst_9 {dimension_numbers = #tpu.dot_dimension_numbers<[1], [0], [0], [1], [0, 0, 1, 1], [], []>} : vector<8x256xbf16>, vector<256x128xbf16>, vector<8x128xf32> -> vector<8x128xf32>
    %cst_10 = arith.constant 0.000000e+00 : f32
    %23 = vector.broadcast %cst_10 : f32 to vector<8x128xf32>
    %24 = arith.maximumf %22, %23 : vector<8x128xf32>
    %25 = arith.truncf %24 : vector<8x128xf32> to vector<8x128xbf16>
    %c0_11 = arith.constant 0 : index
    %c0_12 = arith.constant 0 : index
    %26 = vector.load %arg5[%c0_11, %c0_12] : memref<128x128xbf16, #tpu.memory_space<vmem>>, vector<128x128xbf16>
    %cst_13 = arith.constant dense<0.000000e+00> : vector<8x128xf32>
    %27 = tpu.matmul %25, %26, %cst_13 {dimension_numbers = #tpu.dot_dimension_numbers<[1], [0], [0], [1], [0, 0, 1, 1], [], []>} : vector<8x128xbf16>, vector<128x128xbf16>, vector<8x128xf32> -> vector<8x128xf32>
    %c0_14 = arith.constant 0 : index
    %c0_15 = arith.constant 0 : index
    %28 = vector.load %arg6[%c0_14, %c0_15] : memref<1x128xf32, #tpu.memory_space<vmem>>, vector<1x128xf32>
    %29 = vector.broadcast %28 : vector<1x128xf32> to vector<8x128xf32>
    %30 = arith.addf %27, %29 : vector<8x128xf32>
    %c0_16 = arith.constant 0 : index
    %c0_17 = arith.constant 0 : index
    %31 = vector.load %arg8[%c0_16, %c0_17] : memref<8x128xf32, #tpu.memory_space<vmem>>, vector<8x128xf32>
    tpu.vector_store %arg8[%c0_16, %c0_17], %30 {strides = array<i32>} : memref<8x128xf32, #tpu.memory_space<vmem>>, vector<8x128xf32>,
    %32 = arith.subf %2, %30 : vector<8x128xf32>
    %c0_i32 = arith.constant 0 : i32
    %33 = arith.cmpi ne, %arg0, %c0_i32 : i32
    %34 = arith.extui %33 : i1 to i32
    %c0_i32_18 = arith.constant 0 : i32
    %35 = arith.cmpi ne, %34, %c0_i32_18 : i32
    scf.if %35 {
      %39 = arith.mulf %32, %32 : vector<8x128xf32>
      %40 = vector.shape_cast %39 : vector<8x128xf32> to vector<1x8x128xf32>
      %cst_21 = arith.constant dense<0.000000e+00> : vector<8x128xf32>
      %41 = vector.multi_reduction <add>, %40, %cst_21 [0] : vector<1x8x128xf32> to vector<8x128xf32>
      %c0_22 = arith.constant 0 : index
      %c0_23 = arith.constant 0 : index
      %42 = vector.load %arg7[%c0_22, %c0_23] : memref<8x128xf32, #tpu.memory_space<vmem>>, vector<8x128xf32>
      tpu.vector_store %arg7[%c0_22, %c0_23], %41 {strides = array<i32>} : memref<8x128xf32, #tpu.memory_space<vmem>>, vector<8x128xf32>,
    } else {
    }
    %c0_i32_19 = arith.constant 0 : i32
    %36 = arith.cmpi eq, %arg0, %c0_i32_19 : i32
    %37 = arith.extui %36 : i1 to i32
    %c0_i32_20 = arith.constant 0 : i32
    %38 = arith.cmpi ne, %37, %c0_i32_20 : i32
    scf.if %38 {
      %39 = tpu.iota {dimensions = array<i32: 0>} : vector<8x128xi32>
      %c8_i32 = arith.constant 8 : i32
      %40 = arith.muli %arg0, %c8_i32 : i32
      %41 = vector.broadcast %40 : i32 to vector<8x128xi32>
      %42 = arith.addi %39, %41 : vector<8x128xi32>
      %c2_i32 = arith.constant 2 : i32
      %43 = vector.broadcast %c2_i32 : i32 to vector<8x128xi32>
      %44 = arith.cmpi slt, %42, %43 : vector<8x128xi32>
      %cst_21 = arith.constant 0.000000e+00 : f32
      %45 = vector.broadcast %cst_21 : f32 to vector<8x128xf32>
      %46 = arith.select %44, %32, %45 : vector<8x128xi1>, vector<8x128xf32>
      %47 = arith.mulf %46, %46 : vector<8x128xf32>
      %48 = vector.shape_cast %47 : vector<8x128xf32> to vector<1x8x128xf32>
      %cst_22 = arith.constant dense<0.000000e+00> : vector<8x128xf32>
      %49 = vector.multi_reduction <add>, %48, %cst_22 [0] : vector<1x8x128xf32> to vector<8x128xf32>
      %c0_23 = arith.constant 0 : index
      %c0_24 = arith.constant 0 : index
      %50 = vector.load %arg7[%c0_23, %c0_24] : memref<8x128xf32, #tpu.memory_space<vmem>>, vector<8x128xf32>
      tpu.vector_store %arg7[%c0_23, %c0_24], %49 {strides = array<i32>} : memref<8x128xf32, #tpu.memory_space<vmem>>, vector<8x128xf32>,
    } else {
    }
    return
  }
  func.func @transform_0(%arg0: i32) -> (i32, i32) {
    %c0_i32 = arith.constant 0 : i32
    %c0_i32_0 = arith.constant 0 : i32
    return %arg0, %c0_i32 : i32, i32
  }
  func.func @transform_1(%arg0: i32) -> (i32, i32) {
    %c0_i32 = arith.constant 0 : i32
    %c0_i32_0 = arith.constant 0 : i32
    return %arg0, %c0_i32 : i32, i32
  }
  func.func @transform_2(%arg0: i32) -> (i32, i32) {
    %c0_i32 = arith.constant 0 : i32
    %c0_i32_0 = arith.constant 0 : i32
    return %arg0, %c0_i32 : i32, i32
  }
  func.func @transform_3(%arg0: i32) -> (i32, i32) {
    %c0_i32 = arith.constant 0 : i32
    %c0_i32_0 = arith.constant 0 : i32
    %c0_i32_1 = arith.constant 0 : i32
    return %c0_i32, %c0_i32_0 : i32, i32
  }
  func.func @transform_4(%arg0: i32) -> (i32, i32) {
    %c0_i32 = arith.constant 0 : i32
    %c0_i32_0 = arith.constant 0 : i32
    %c0_i32_1 = arith.constant 0 : i32
    return %c0_i32, %c0_i32_0 : i32, i32
  }
  func.func @transform_5(%arg0: i32) -> (i32, i32) {
    %c0_i32 = arith.constant 0 : i32
    %c0_i32_0 = arith.constant 0 : i32
    %c0_i32_1 = arith.constant 0 : i32
    return %c0_i32, %c0_i32_0 : i32, i32
  }
  func.func @transform_6(%arg0: i32) -> (i32, i32) {
    %c0_i32 = arith.constant 0 : i32
    %c0_i32_0 = arith.constant 0 : i32
    return %arg0, %c0_i32 : i32, i32
  }
  func.func @transform_7(%arg0: i32) -> (i32, i32) {
    %c0_i32 = arith.constant 0 : i32
    %c0_i32_0 = arith.constant 0 : i32
    return %arg0, %c0_i32 : i32, i32
  }
}

</mosaic_0001>

<llo_original>
// kernel: tpu_custom_call.1
$region0: #{tpu_custom_call.1}
  #allocation0 [shape = 'u32[]', space=smem, size = 0x4, offset = 0x4, fixed_abs, tag = 'smem constant byte address 0x4 - core index']
  #allocation1 [shape = 'u32[144,128]{1,0:T(1,128)}', space=vmem, size = 0x12000, scoped, tag = 'internal scratch']
  %s0 = inlined_call_operand.hbm [shape: f32[8,128], index: 0, kind: input, shape index: {}]
  %s1 = inlined_call_operand.hbm [shape: f32[8,128], index: 1, kind: input, shape index: {}]
  %s2 = inlined_call_operand.hbm [shape: f32[8,128], index: 2, kind: input, shape index: {}]
  %s3 = inlined_call_operand.hbm [shape: bf16[256,128], index: 3, kind: input, shape index: {}]
  %s4 = inlined_call_operand.hbm [shape: bf16[128,128], index: 4, kind: input, shape index: {}]
  %s5 = inlined_call_operand.vmem [shape: f32[1,128], index: 5, kind: input, shape index: {}]
  %s6 = inlined_call_operand.hbm [shape: f32[8,128], index: 6, kind: output, shape index: {0}]
  %s7 = inlined_call_operand.hbm [shape: f32[8,128], index: 7, kind: output, shape index: {1}]
  %8 = xla_tuple %s6, %s7
  %s9 = sld [smem:[#allocation0]]
  $region70: #{tpu_custom_call.1} parent=0
    _
  %s11 = ssub.s32 1, %s9
  %s12 = scalar_select 0, %s11, %s9
  $region1: #{tpu_custom_call.1} parent=0
    #allocation2 [shape = 'u8[4096]{0}', space=vmem, size = 0x1000, scoped, tag = 'input window, operand 0, single buffered']
    #allocation3 [shape = 's32[1]{0}', space=sflag, size = 0x4, scoped, tag = 'scoped memory for tpu_custom_call.1']
    #allocation4 [shape = 's32[1]{0}', space=sflag, size = 0x4, scoped, tag = 'scoped memory for tpu_custom_call.1']
    #allocation5 [shape = 'u8[4096]{0}', space=vmem, size = 0x1000, scoped, tag = 'input window, operand 1, single buffered']
    #allocation6 [shape = 's32[1]{0}', space=sflag, size = 0x4, scoped, tag = 'scoped memory for tpu_custom_call.1']
    #allocation7 [shape = 'u8[4096]{0}', space=vmem, size = 0x1000, scoped, tag = 'input window, operand 2, single buffered']
    #allocation8 [shape = 'u8[65536]{0}', space=vmem, size = 0x10000, scoped, tag = 'input window, operand 3, single buffered']
    #allocation9 [shape = 's32[1]{0}', space=sflag, size = 0x4, scoped, tag = 'scoped memory for tpu_custom_call.1']
    #allocation10 [shape = 'u8[32768]{0}', space=vmem, size = 0x8000, scoped, tag = 'input window, operand 4, single buffered']
    #allocation11 [shape = 'u8[4096]{0}', space=vmem, size = 0x1000, scoped, tag = 'output window, operand 0, single buffered']
    #allocation12 [shape = 'u8[4096]{0}', space=vmem, size = 0x1000, scoped, tag = 'output window, operand 1, single buffered']
    #allocation13 [shape = 's32[1]{0}', space=sflag, size = 0x4, scoped, tag = 'scoped memory for tpu_custom_call.1']
    %13 = vsyncpa [#allocation3], 0
    %14 = vsyncpa [#allocation6], 0
    %15 = vsyncpa [#allocation9], 0
    %16 = vsyncpa [#allocation4], 0
    %17 = vsyncpa [#allocation13], 0
    // Predicated region
    $region2: #{tpu_custom_call.1} parent=1 // pred_check
      _
    $region3: #{tpu_custom_call.1} parent=1 // pred_check_branch
      %19 = sbr.rel (0) target = $region5
    $region4: #{tpu_custom_call.1} parent=1 // pred_region
      %s21 = ssub.s32 128, 128
      %22 = vsyncadd [#allocation3], %s21
      %s24 = sshll.u32 [#allocation2], 4
      %s25 = int_to_ptr.vmem [resolvable:$true] %s24
      %27 = dma.hbm_to_vmem [thread:$0]  %s0, 128, %s25, [#allocation3]
    $region5: #{tpu_custom_call.1} parent=1 // pred_fallthru
      _
    // Predicated region
    $region6: #{tpu_custom_call.1} parent=1 // pred_check
      _
    $region7: #{tpu_custom_call.1} parent=1 // pred_check_branch
      %29 = sbr.rel (0) target = $region9
    $region8: #{tpu_custom_call.1} parent=1 // pred_region
      %s31 = ssub.s32 128, 128
      %32 = vsyncadd [#allocation6], %s31
      %s34 = sshll.u32 [#allocation5], 4
      %s35 = int_to_ptr.vmem [resolvable:$true] %s34
      %37 = dma.hbm_to_vmem [thread:$0]  %s1, 128, %s35, [#allocation6]
    $region9: #{tpu_custom_call.1} parent=1 // pred_fallthru
      _
    // Predicated region
    $region10: #{tpu_custom_call.1} parent=1 // pred_check
      _
    $region11: #{tpu_custom_call.1} parent=1 // pred_check_branch
      %39 = sbr.rel (0) target = $region13
    $region12: #{tpu_custom_call.1} parent=1 // pred_region
      %s41 = ssub.s32 128, 128
      %42 = vsyncadd [#allocation6], %s41
      %s44 = sshll.u32 [#allocation7], 4
      %s45 = int_to_ptr.vmem [resolvable:$true] %s44
      %47 = dma.hbm_to_vmem [thread:$0]  %s2, 128, %s45, [#allocation6]
    $region13: #{tpu_custom_call.1} parent=1 // pred_fallthru
      _
    // Predicated region
    $region14: #{tpu_custom_call.1} parent=1 // pred_check
      _
    $region15: #{tpu_custom_call.1} parent=1 // pred_check_branch
      %49 = sbr.rel (0) target = $region17
    $region16: #{tpu_custom_call.1} parent=1 // pred_region
      %s51 = ssub.s32 2048, 2048
      %52 = vsyncadd [#allocation9], %s51
      %s53 = sshll.u32 [#allocation8], 4
      %s54 = int_to_ptr.vmem [resolvable:$true] %s53
      %59 = dma.hbm_to_vmem [thread:$0]  %s3, 2048, %s54, [#allocation9], 64, 64, 4
    $region17: #{tpu_custom_call.1} parent=1 // pred_fallthru
      _
    // Predicated region
    $region18: #{tpu_custom_call.1} parent=1 // pred_check
      _
    $region19: #{tpu_custom_call.1} parent=1 // pred_check_branch
      %61 = sbr.rel (0) target = $region21
    $region20: #{tpu_custom_call.1} parent=1 // pred_region
      %s63 = ssub.s32 1024, 1024
      %64 = vsyncadd [#allocation9], %s63
      %s65 = sshll.u32 [#allocation10], 4
      %s66 = int_to_ptr.vmem [resolvable:$true] %s65
      %71 = dma.hbm_to_vmem [thread:$0]  %s4, 1024, %s66, [#allocation9], 64, 64, 4
    $region21: #{tpu_custom_call.1} parent=1 // pred_fallthru
      _
    // Predicated region
    $region22: #{tpu_custom_call.1} parent=1 // pred_check
      _
    $region23: #{tpu_custom_call.1} parent=1 // pred_check_branch
      %73 = sbr.rel (0) target = $region25
    $region24: #{tpu_custom_call.1} parent=1 // pred_region
      _
    $region25: #{tpu_custom_call.1} parent=1 // pred_fallthru
      _
    // Predicated region
    $region26: #{tpu_custom_call.1} parent=1 // pred_check
      _
    $region27: #{tpu_custom_call.1} parent=1 // pred_check_branch
      %75 = sbr.rel (0) target = $region29
    $region28: #{tpu_custom_call.1} parent=1 // pred_region
      %76 = dma.done [#allocation3], 128
    $region29: #{tpu_custom_call.1} parent=1 // pred_fallthru
      _
    // Predicated region
    $region30: #{tpu_custom_call.1} parent=1 // pred_check
      _
    $region31: #{tpu_custom_call.1} parent=1 // pred_check_branch
      %78 = sbr.rel (0) target = $region33
    $region32: #{tpu_custom_call.1} parent=1 // pred_region
      %79 = dma.done [#allocation6], 128
    $region33: #{tpu_custom_call.1} parent=1 // pred_fallthru
      _
    // Predicated region
    $region34: #{tpu_custom_call.1} parent=1 // pred_check
      _
    $region35: #{tpu_custom_call.1} parent=1 // pred_check_branch
      %81 = sbr.rel (0) target = $region37
    $region36: #{tpu_custom_call.1} parent=1 // pred_region
      %82 = dma.done [#allocation6], 128
    $region37: #{tpu_custom_call.1} parent=1 // pred_fallthru
      _
    // Predicated region
    $region38: #{tpu_custom_call.1} parent=1 // pred_check
      _
    $region39: #{tpu_custom_call.1} parent=1 // pred_check_branch
      %84 = sbr.rel (0) target = $region41
    $region40: #{tpu_custom_call.1} parent=1 // pred_region
      %85 = dma.done [#allocation9], 2048
    $region41: #{tpu_custom_call.1} parent=1 // pred_fallthru
      _
    // Predicated region
    $region42: #{tpu_custom_call.1} parent=1 // pred_check
      _
    $region43: #{tpu_custom_call.1} parent=1 // pred_check_branch
      %87 = sbr.rel (0) target = $region45
    $region44: #{tpu_custom_call.1} parent=1 // pred_region
      %88 = dma.done [#allocation9], 1024
    $region45: #{tpu_custom_call.1} parent=1 // pred_fallthru
      _
    %v90 = vld [vmem:[#allocation2] sm:$0xff]
    %v91 = vld [vmem:[#allocation5] sm:$0xff]
    %v92 = vld [vmem:[#allocation7] sm:$0xff]
    %v93 = vmul.f32 %v90, 2.0
    %v94 = vsub.f32 %v93, 1.0
    %v95 = vsub.f32 1.0, %v91
    %97 = vset.pattern.permute.xlu0 65
    %98 = vperm.xlu0 %97, %v95
    %v99 = vpop.permute.xlu0 %98
    %v101 = vmul.f32 %v99, %v94
    %103 = vset.pattern.permute.xlu0 65
    %104 = vperm.xlu0 %103, %v91
    %v105 = vpop.permute.xlu0 %104
    %v107 = vmul.f32 %v105, %v91
    %v108 = vadd.f32 %v101, %v107
    %109 = vset.pattern.permute.xlu0 66
    %110 = vperm.xlu0 %109, %v91
    %v111 = vpop.permute.xlu0 %110
    %v113 = vmul.f32 %v111, %v92
    %v114 = vadd.f32 %v108, %v113
    %v115 = vpack.c.bf16 %v114, %v114
    %v116 = vpack.c.bf16 %v91, %v91
    %v117 = vld [vmem:[#allocation8] sm:$0xf]
    %v118 = vld [vmem:[#allocation8 + $0x4] sm:$0xf]
    %v119 = vld [vmem:[#allocation8 + $0x8] sm:$0xf]
    %v120 = vld [vmem:[#allocation8 + $0xc] sm:$0xf]
    %v121 = vld [vmem:[#allocation8 + $0x10] sm:$0xf]
    %v122 = vld [vmem:[#allocation8 + $0x14] sm:$0xf]
    %v123 = vld [vmem:[#allocation8 + $0x18] sm:$0xf]
    %v124 = vld [vmem:[#allocation8 + $0x1c] sm:$0xf]
    %v125 = vld [vmem:[#allocation8 + $0x20] sm:$0xf]
    %v126 = vld [vmem:[#allocation8 + $0x24] sm:$0xf]
    %v127 = vld [vmem:[#allocation8 + $0x28] sm:$0xf]
    %v128 = vld [vmem:[#allocation8 + $0x2c] sm:$0xf]
    %v129 = vld [vmem:[#allocation8 + $0x30] sm:$0xf]
    %v130 = vld [vmem:[#allocation8 + $0x34] sm:$0xf]
    %v131 = vld [vmem:[#allocation8 + $0x38] sm:$0xf]
    %v132 = vld [vmem:[#allocation8 + $0x3c] sm:$0xf]
    %v133 = vld [vmem:[#allocation8 + $0x40] sm:$0xf]
    %v134 = vld [vmem:[#allocation8 + $0x44] sm:$0xf]
    %v135 = vld [vmem:[#allocation8 + $0x48] sm:$0xf]
    %v136 = vld [vmem:[#allocation8 + $0x4c] sm:$0xf]
    %v137 = vld [vmem:[#allocation8 + $0x50] sm:$0xf]
    %v138 = vld [vmem:[#allocation8 + $0x54] sm:$0xf]
    %v139 = vld [vmem:[#allocation8 + $0x58] sm:$0xf]
    %v140 = vld [vmem:[#allocation8 + $0x5c] sm:$0xf]
    %v141 = vld [vmem:[#allocation8 + $0x60] sm:$0xf]
    %v142 = vld [vmem:[#allocation8 + $0x64] sm:$0xf]
    %v143 = vld [vmem:[#allocation8 + $0x68] sm:$0xf]
    %v144 = vld [vmem:[#allocation8 + $0x6c] sm:$0xf]
    %v145 = vld [vmem:[#allocation8 + $0x70] sm:$0xf]
    %v146 = vld [vmem:[#allocation8 + $0x74] sm:$0xf]
    %v147 = vld [vmem:[#allocation8 + $0x78] sm:$0xf]
    %v148 = vld [vmem:[#allocation8 + $0x7c] sm:$0xf]
    %v181 = vunpack.c.l.b16 %v117
    %v182 = vunpack.c.l.b16 %v118
    %v183 = vunpack.c.l.b16 %v119
    %v184 = vunpack.c.l.b16 %v120
    %v185 = vunpack.c.l.b16 %v121
    %v186 = vunpack.c.l.b16 %v122
    %v187 = vunpack.c.l.b16 %v123
    %v188 = vunpack.c.l.b16 %v124
    %v189 = vunpack.c.l.b16 %v125
    %v190 = vunpack.c.l.b16 %v126
    %v191 = vunpack.c.l.b16 %v127
    %v192 = vunpack.c.l.b16 %v128
    %v193 = vunpack.c.l.b16 %v129
    %v194 = vunpack.c.l.b16 %v130
    %v195 = vunpack.c.l.b16 %v131
    %v196 = vunpack.c.l.b16 %v132
    %v197 = vunpack.c.l.b16 %v133
    %v198 = vunpack.c.l.b16 %v134
    %v199 = vunpack.c.l.b16 %v135
    %v200 = vunpack.c.l.b16 %v136
    %v201 = vunpack.c.l.b16 %v137
    %v202 = vunpack.c.l.b16 %v138
    %v203 = vunpack.c.l.b16 %v139
    %v204 = vunpack.c.l.b16 %v140
    %v205 = vunpack.c.l.b16 %v141
    %v206 = vunpack.c.l.b16 %v142
    %v207 = vunpack.c.l.b16 %v143
    %v208 = vunpack.c.l.b16 %v144
    %v209 = vunpack.c.l.b16 %v145
    %v210 = vunpack.c.l.b16 %v146
    %v211 = vunpack.c.l.b16 %v147
    %v212 = vunpack.c.l.b16 %v148
    %v213 = vpack.c.b16 %v182, %v181
    %v214 = vpack.c.b16 %v184, %v183
    %v215 = vpack.c.b16 %v186, %v185
    %v216 = vpack.c.b16 %v188, %v187
    %v217 = vpack.c.b16 %v190, %v189
    %v218 = vpack.c.b16 %v192, %v191
    %v219 = vpack.c.b16 %v194, %v193
    %v220 = vpack.c.b16 %v196, %v195
    %v221 = vpack.c.b16 %v198, %v197
    %v222 = vpack.c.b16 %v200, %v199
    %v223 = vpack.c.b16 %v202, %v201
    %v224 = vpack.c.b16 %v204, %v203
    %v225 = vpack.c.b16 %v206, %v205
    %v226 = vpack.c.b16 %v208, %v207
    %v227 = vpack.c.b16 %v210, %v209
    %v228 = vpack.c.b16 %v212, %v211
    %245 = vmatprep.subr.bf16.mxu0 0
    %246 = vmatpush1.bf16.msra.mxu0 %v213
    %247 = vmatprep.subr.bf16.mxu0 0
    %248 = vmatpush1.bf16.msra.mxu0 %v214
    %249 = vmatprep.subr.bf16.mxu0 0
    %250 = vmatpush1.bf16.msra.mxu0 %v215
    %251 = vmatprep.subr.bf16.mxu0 0
    %252 = vmatpush1.bf16.msra.mxu0 %v216
    %253 = vmatprep.subr.bf16.mxu0 0
    %254 = vmatpush1.bf16.msra.mxu0 %v217
    %255 = vmatprep.subr.bf16.mxu0 0
    %256 = vmatpush1.bf16.msra.mxu0 %v218
    %257 = vmatprep.subr.bf16.mxu0 0
    %258 = vmatpush1.bf16.msra.mxu0 %v219
    %259 = vmatprep.subr.bf16.mxu0 0
    %260 = vmatpush1.bf16.msra.mxu0 %v220
    %261 = vmatprep.subr.bf16.mxu0 0
    %262 = vmatpush1.bf16.msra.mxu0 %v221
    %263 = vmatprep.subr.bf16.mxu0 0
    %264 = vmatpush1.bf16.msra.mxu0 %v222
    %265 = vmatprep.subr.bf16.mxu0 0
    %266 = vmatpush1.bf16.msra.mxu0 %v223
    %267 = vmatprep.subr.bf16.mxu0 0
    %268 = vmatpush1.bf16.msra.mxu0 %v224
    %269 = vmatprep.subr.bf16.mxu0 0
    %270 = vmatpush1.bf16.msra.mxu0 %v225
    %271 = vmatprep.subr.bf16.mxu0 0
    %272 = vmatpush1.bf16.msra.mxu0 %v226
    %273 = vmatprep.subr.bf16.mxu0 0
    %274 = vmatpush1.bf16.msra.mxu0 %v227
    %275 = vmatprep.subr.bf16.mxu0 0
    %276 = vmatpush1.bf16.msra.mxu0 %v228
    %277 = vmatprep.mubr.bf16.mxu0 %v116
    %278 = vmatmul.mubr.bf16.gmra.mrb[0].mxu0 %v115
    %v279 = vpop.f32.mrb[0].mxu0
    %v280 = vadd.f32 0.0, %v279
    %v281 = vpop.f32.mrb[0].mxu0
    %v282 = vpop.f32.mrb[0].mxu0
    %v283 = vpop.f32.mrb[0].mxu0
    %284 = vdwg.mxu0
    %v285 = vmax.f32 %v280, 0.0
    %v286 = vpack.c.bf16 %v285, %v285
    %v287 = vld [vmem:[#allocation10] sm:$0xf]
    %v288 = vld [vmem:[#allocation10 + $0x4] sm:$0xf]
    %v289 = vld [vmem:[#allocation10 + $0x8] sm:$0xf]
    %v290 = vld [vmem:[#allocation10 + $0xc] sm:$0xf]
    %v291 = vld [vmem:[#allocation10 + $0x10] sm:$0xf]
    %v292 = vld [vmem:[#allocation10 + $0x14] sm:$0xf]
    %v293 = vld [vmem:[#allocation10 + $0x18] sm:$0xf]
    %v294 = vld [vmem:[#allocation10 + $0x1c] sm:$0xf]
    %v295 = vld [vmem:[#allocation10 + $0x20] sm:$0xf]
    %v296 = vld [vmem:[#allocation10 + $0x24] sm:$0xf]
    %v297 = vld [vmem:[#allocation10 + $0x28] sm:$0xf]
    %v298 = vld [vmem:[#allocation10 + $0x2c] sm:$0xf]
    %v299 = vld [vmem:[#allocation10 + $0x30] sm:$0xf]
    %v300 = vld [vmem:[#allocation10 + $0x34] sm:$0xf]
    %v301 = vld [vmem:[#allocation10 + $0x38] sm:$0xf]
    %v302 = vld [vmem:[#allocation10 + $0x3c] sm:$0xf]
    %v303 = vld [vmem:[%s5] sm:$0x1]
    %v305 = vlaneseq
    %v306 = vshrl.u32 %v305, 7
    %v307 = vsub.s32 0, %v306
    %v308 = vrot.slane %v303, %v307
    %v326 = vunpack.c.l.b16 %v287
    %v327 = vunpack.c.l.b16 %v288
    %v328 = vunpack.c.l.b16 %v289
    %v329 = vunpack.c.l.b16 %v290
    %v330 = vunpack.c.l.b16 %v291
    %v331 = vunpack.c.l.b16 %v292
    %v332 = vunpack.c.l.b16 %v293
    %v333 = vunpack.c.l.b16 %v294
    %v334 = vunpack.c.l.b16 %v295
    %v335 = vunpack.c.l.b16 %v296
    %v336 = vunpack.c.l.b16 %v297
    %v337 = vunpack.c.l.b16 %v298
    %v338 = vunpack.c.l.b16 %v299
    %v339 = vunpack.c.l.b16 %v300
    %v340 = vunpack.c.l.b16 %v301
    %v341 = vunpack.c.l.b16 %v302
    %v342 = vpack.c.b16 %v327, %v326
    %v343 = vpack.c.b16 %v329, %v328
    %v344 = vpack.c.b16 %v331, %v330
    %v345 = vpack.c.b16 %v333, %v332
    %v346 = vpack.c.b16 %v335, %v334
    %v347 = vpack.c.b16 %v337, %v336
    %v348 = vpack.c.b16 %v339, %v338
    %v349 = vpack.c.b16 %v341, %v340
    %358 = vmatprep.subr.bf16.mxu0 0
    %359 = vmatpush1.bf16.msra.mxu0 %v342
    %360 = vmatprep.subr.bf16.mxu0 0
    %361 = vmatpush1.bf16.msra.mxu0 %v343
    %362 = vmatprep.subr.bf16.mxu0 0
    %363 = vmatpush1.bf16.msra.mxu0 %v344
    %364 = vmatprep.subr.bf16.mxu0 0
    %365 = vmatpush1.bf16.msra.mxu0 %v345
    %366 = vmatprep.subr.bf16.mxu0 0
    %367 = vmatpush1.bf16.msra.mxu0 %v346
    %368 = vmatprep.subr.bf16.mxu0 0
    %369 = vmatpush1.bf16.msra.mxu0 %v347
    %370 = vmatprep.subr.bf16.mxu0 0
    %371 = vmatpush1.bf16.msra.mxu0 %v348
    %372 = vmatprep.subr.bf16.mxu0 0
    %373 = vmatpush1.bf16.msra.mxu0 %v349
    %374 = vmatprep.subr.bf16.mxu0 0
    %375 = vmatpush1.bf16.msra.mxu0 0
    %376 = vmatprep.subr.bf16.mxu0 0
    %377 = vmatpush1.bf16.msra.mxu0 0
    %378 = vmatprep.subr.bf16.mxu0 0
    %379 = vmatpush1.bf16.msra.mxu0 0
    %380 = vmatprep.subr.bf16.mxu0 0
    %381 = vmatpush1.bf16.msra.mxu0 0
    %382 = vmatprep.subr.bf16.mxu0 0
    %383 = vmatpush1.bf16.msra.mxu0 0
    %384 = vmatprep.subr.bf16.mxu0 0
    %385 = vmatpush1.bf16.msra.mxu0 0
    %386 = vmatprep.subr.bf16.mxu0 0
    %387 = vmatpush1.bf16.msra.mxu0 0
    %388 = vmatprep.subr.bf16.mxu0 0
    %389 = vmatpush1.bf16.msra.mxu0 0
    %390 = vmatprep.mubr.bf16.mxu0 0
    %391 = vmatmul.mubr.bf16.gmra.mrb[0].mxu0 %v286
    %v392 = vpop.f32.mrb[0].mxu0
    %v393 = vadd.f32 %v308, %v392
    %v394 = vpop.f32.mrb[0].mxu0
    %v395 = vpop.f32.mrb[0].mxu0
    %v396 = vpop.f32.mrb[0].mxu0
    %397 = vdwg.mxu0
    %398 = vst [vmem:[#allocation12] sm:$0xff] %v393
    %v399 = vsub.f32 %v92, %v393
    %p400 = scmp.ne.s32.totalorder 0, 0
    // Predicated region
    $region46: #{tpu_custom_call.1} parent=1 // pred_check
      %p401 = pneg %p400
    $region47: #{tpu_custom_call.1} parent=1 // pred_check_branch
      %403 = sbr.rel (%p401) target = $region49
    $region48: #{tpu_custom_call.1} parent=1 // pred_region
      %v404 = vmul.f32 %v399, %v399
      %v405 = vadd.f32 %v404, 0.0
      %406 = vst [vmem:[#allocation11] sm:$0xff] %v405
    $region49: #{tpu_custom_call.1} parent=1 // pred_fallthru
      _
    %p407 = scmp.eq.s32.totalorder 0, 0
    // Predicated region
    $region50: #{tpu_custom_call.1} parent=1 // pred_check
      %p408 = pneg %p407
    $region51: #{tpu_custom_call.1} parent=1 // pred_check_branch
      %410 = sbr.rel (%p408) target = $region53
    $region52: #{tpu_custom_call.1} parent=1 // pred_region
      %v411 = vlaneseq
      %v412 = vshrl.u32 %v411, 7
      %s413 = smul.u32 0, 8
      %v414 = vstv %s413
      %v415 = vadd.s32 %v412, %v414
      %vm416 = vcmp.lt.s32.totalorder %v415, 2
      %v417 = vsel %vm416, %v399, 0.0
      %v418 = vmul.f32 %v417, %v417
      %v419 = vadd.f32 %v418, 0.0
      %420 = vst [vmem:[#allocation11] sm:$0xff] %v419
    $region53: #{tpu_custom_call.1} parent=1 // pred_fallthru
      _
    // Predicated region
    $region54: #{tpu_custom_call.1} parent=1 // pred_check
      _
    $region55: #{tpu_custom_call.1} parent=1 // pred_check_branch
      %422 = sbr.rel (0) target = $region57
    $region56: #{tpu_custom_call.1} parent=1 // pred_region
      %s424 = ssub.s32 128, 128
      %425 = vsyncadd [#allocation4], %s424
      %s427 = sshll.u32 [#allocation11], 4
      %s428 = int_to_ptr.vmem [resolvable:$true] %s427
      %430 = dma.vmem_to_hbm [thread:$0]  %s428, 128, %s6, [#allocation4]
    $region57: #{tpu_custom_call.1} parent=1 // pred_fallthru
      _
    // Predicated region
    $region58: #{tpu_custom_call.1} parent=1 // pred_check
      _
    $region59: #{tpu_custom_call.1} parent=1 // pred_check_branch
      %432 = sbr.rel (0) target = $region61
    $region60: #{tpu_custom_call.1} parent=1 // pred_region
      %s434 = ssub.s32 128, 128
      %435 = vsyncadd [#allocation13], %s434
      %s437 = sshll.u32 [#allocation12], 4
      %s438 = int_to_ptr.vmem [resolvable:$true] %s437
      %440 = dma.vmem_to_hbm [thread:$0]  %s438, 128, %s7, [#allocation13]
    $region61: #{tpu_custom_call.1} parent=1 // pred_fallthru
      _
    // Predicated region
    $region62: #{tpu_custom_call.1} parent=1 // pred_check
      _
    $region63: #{tpu_custom_call.1} parent=1 // pred_check_branch
      %442 = sbr.rel (0) target = $region65
    $region64: #{tpu_custom_call.1} parent=1 // pred_region
      %443 = dma.done [#allocation4], 128
    $region65: #{tpu_custom_call.1} parent=1 // pred_fallthru
      _
    // Predicated region
    $region66: #{tpu_custom_call.1} parent=1 // pred_check
      _
    $region67: #{tpu_custom_call.1} parent=1 // pred_check_branch
      %445 = sbr.rel (0) target = $region69
    $region68: #{tpu_custom_call.1} parent=1 // pred_region
      %446 = dma.done [#allocation13], 128
    $region69: #{tpu_custom_call.1} parent=1 // pred_fallthru
      _
    %447 = vsyncpa [#allocation3], 1
    %448 = vsyncpa [#allocation6], 1
    %449 = vsyncpa [#allocation9], 1
    %450 = vsyncpa [#allocation4], 1
    %451 = vsyncpa [#allocation13], 1

</llo_original>
